<compile_context>
chip_gen: v7x
topology: tpu7x:2x2x1
jax: 0.10.0
libtpu: 0.0.40
codegen_flags: <defaults>
</compile_context>

<pallas_src>
import jax
import jax.numpy as jnp
from jax.experimental import pallas as pl
from jax.experimental.pallas import tpu as pltpu


def _disc_uncond_kernel(x_ref, wt_ref, b_ref, o_ref):
    # x_ref : (TB, F) inputs tile (native dtype)
    # wt_ref: (F, 1)  f32 W.T, VMEM-resident (constant index_map)
    # b_ref : (1, 1)  SMEM bias
    # o_ref : (1, 1, TB) lane-dense logits tile
    x = x_ref[...]
    wt = wt_ref[...]
    if x.dtype != jnp.float32:
        # Round the tiny resident vector down instead of upcasting the whole x tile.
        wt = wt.astype(x.dtype)
    p = jnp.dot(x, wt, preferred_element_type=jnp.float32)          # (TB, 1), K=F on MXU
    o_ref[...] = (p[:, 0] + b_ref[0, 0])[None, None, :].astype(o_ref.dtype)


def _disc_cond_kernel(x_ref, y_ref, wct_ref, b_ref, o_ref):
    # x_ref  : (TB, F)  inputs tile (native dtype)
    # y_ref  : (TB, 1)  int32 class ids
    # wct_ref: (F, NC)  f32 combined table (W + E).T, VMEM-resident
    # b_ref  : (1, 1)   SMEM bias
    # o_ref  : (1, 1, TB) lane-dense logits tile
    tb = x_ref.shape[0]
    nc = wct_ref.shape[1]
    x = x_ref[...]
    wct = wct_ref[...]
    if x.dtype != jnp.float32:
        wct = wct.astype(x.dtype)
    # Contract over F on the MXU; result is only (TB, NC).
    p = jnp.dot(x, wct, preferred_element_type=jnp.float32)         # (TB, NC)
    cls = jax.lax.broadcasted_iota(jnp.int32, (tb, nc), 1)
    s = jnp.sum(jnp.where(cls == y_ref[...], p, 0.0), axis=1)       # pick P[t, y[t]]
    o_ref[...] = (s + b_ref[0, 0])[None, None, :].astype(o_ref.dtype)


def _round_up(x, m):
    return ((x + m - 1) // m) * m


def _vmem_capacity_bytes():
    # Generation-aware VMEM capacity; fall back to v7x's 64 MiB/TC (safe everywhere).
    try:
        return int(pltpu.get_tpu_info().vmem_capacity_bytes)
    except Exception:
        return 64 * 1024 * 1024


def _pick_batch_tile(batch, n_features, itemsize, conditional, n_classes, vmem_cap):
    budget = int(0.60 * vmem_cap)                 # headroom for output bufs / compiler scratch
    per_row = 2 * n_features * itemsize           # double-buffered x DMA
    if conditional:
        per_row += 2 * 128 * 4                    # (tb,1) int32 y tile lane-pads to 128, x2 bufs
        per_row += max(128, n_classes) * 4        # live (TB, NC) f32 MXU result
    tb = max(128, (budget // max(per_row, 1)) // 128 * 128)   # 128-aligned => unmasked vst
    if batch >= 256:
        # Keep >= 2 grid steps so v7x can shard the "parallel" axis over both TensorCores.
        tb = min(tb, _round_up(pl.cdiv(batch, 2), 128))
    # Never request a block taller than the array itself (block == full dim is always legal).
    return min(tb, batch) if batch >= 128 else batch


def linear_discriminator(inputs, weight, bias, embedding=None, y=None, *, batch_tile=None):
    """inputs: (B, F); weight: (1, F); bias: (1,); embedding: (n_classes, F); y: (B,) int."""
    B, F = inputs.shape
    out_dtype = jnp.float32                       # match PyTorch module (f32 logits)
    itemsize = jnp.dtype(inputs.dtype).itemsize
    conditional = y is not None
    nc = embedding.shape[0] if conditional else 1
    vmem_cap = _vmem_capacity_bytes()

    if batch_tile is not None:
        tb = min(int(batch_tile), B)
        if tb < B:
            tb = max(8, (tb // 8) * 8)            # partial blocks need an 8-aligned sublane tile
    else:
        tb = _pick_batch_tile(B, F, itemsize, conditional, nc, vmem_cap)
    n_tiles = pl.cdiv(B, tb)                      # last block may be partial; no jnp.pad of x

    bias_smem = jnp.asarray(bias, jnp.float32).reshape(1, 1)
    compiler_params = pltpu.CompilerParams(
        dimension_semantics=("parallel",),
        vmem_limit_bytes=min(int(0.90 * vmem_cap), 128 * 1024 * 1024),
    )
    out_shape = jax.ShapeDtypeStruct((n_tiles, 1, tb), out_dtype)
    out_spec = pl.BlockSpec((1, 1, tb), lambda i: (i, 0, 0))      # lane-dense logits
    x_spec = pl.BlockSpec((tb, F), lambda i: (i, 0))              # x tile, double-buffered
    smem_spec = pl.BlockSpec(memory_space=pltpu.MemorySpace.SMEM)

    if not conditional:
        wt = jnp.asarray(weight, jnp.float32).reshape(1, F).T     # (F, 1), f32, resident
        out = pl.pallas_call(
            _disc_uncond_kernel,
            out_shape=out_shape,
            grid_spec=pl.GridSpec(
                grid=(n_tiles,),
                in_specs=[x_spec,
                          pl.BlockSpec((F, 1), lambda i: (0, 0)),   # W.T, stays resident
                          smem_spec],
                out_specs=out_spec,
            ),
            compiler_params=compiler_params,
        )(inputs, wt, bias_smem)
    else:
        assert embedding is not None, "y was given but the module has no embedding"
        # Fold the linear weight into the embedding table once (tiny F x NC, kept in f32
        # so no extra low-precision rounding of (W + E) is introduced):
        #   x @ W.T + b + sum(x * E[y], 1) == sum(x * (W + E)[y], 1) + b
        wct = (jnp.asarray(embedding, jnp.float32)
               + jnp.asarray(weight, jnp.float32)).T              # (F, NC), f32, resident
        y_col = jnp.asarray(y, jnp.int32).reshape(B, 1)
        out = pl.pallas_call(
            _disc_cond_kernel,
            out_shape=out_shape,
            grid_spec=pl.GridSpec(
                grid=(n_tiles,),
                in_specs=[x_spec,
                          pl.BlockSpec((tb, 1), lambda i: (i, 0)),  # y ids tile
                          pl.BlockSpec((F, nc), lambda i: (0, 0)),  # (W+E).T, stays resident
                          smem_spec],
                out_specs=out_spec,
            ),
            compiler_params=compiler_params,
        )(inputs, y_col, wct, bias_smem)

    return out.reshape(n_tiles * tb, 1)[:B]


def init_params(key, n_features, n_classes=1):
    """Deterministic init matching PyTorch defaults (uniform for Linear, N(0,1) for Embedding)."""
    kw, kb, ke = jax.random.split(key, 3)
    bound = 1.0 / jnp.sqrt(jnp.float32(n_features))
    weight = jax.random.uniform(kw, (1, n_features), jnp.float32, -bound, bound)
    bias = jax.random.uniform(kb, (1,), jnp.float32, -bound, bound)
    embedding = None
    if n_classes > 1:
        embedding = jax.random.normal(ke, (n_classes, n_features), jnp.float32)
    return weight, bias, embedding


if __name__ == "__main__":
    B, F, n_classes = 8, 32, 4

    key = jax.random.PRNGKey(0)
    kx, ky, kp = jax.random.split(key, 3)

    x = jax.random.normal(kx, (B, F), jnp.float32)
    y = jax.random.randint(ky, (B,), 0, n_classes)
    weight, bias, embedding = init_params(kp, F, n_classes)

    # Conditional path (y provided) and unconditional path (y=None, separate kernel).
    d_cond = jax.block_until_ready(linear_discriminator(x, weight, bias, embedding, y))
    d_uncond = jax.block_until_ready(linear_discriminator(x, weight, bias))

    # Pure-JAX reference check.
    ref_uncond = x @ weight.T + bias
    w_y = jnp.take(embedding, y, axis=0)
    ref_cond = ref_uncond + jnp.sum(x * w_y, axis=1, keepdims=True)
    assert d_cond.shape == (B, 1) and d_uncond.shape == (B, 1)
    assert jnp.allclose(d_uncond, ref_uncond, atol=1e-5, rtol=1e-5)
    assert jnp.allclose(d_cond, ref_cond, atol=1e-5, rtol=1e-5)

    # Multi-tile path: B not a multiple of the tile, partial last block, no jnp.pad.
    B2 = 200
    x2 = jax.random.normal(jax.random.PRNGKey(7), (B2, F), jnp.float32)
    y2 = jax.random.randint(jax.random.PRNGKey(8), (B2,), 0, n_classes)
    d2 = jax.block_until_ready(
        linear_discriminator(x2, weight, bias, embedding, y2, batch_tile=128))
    ref2 = x2 @ weight.T + bias + jnp.sum(x2 * jnp.take(embedding, y2, axis=0),
                                          axis=1, keepdims=True)
    assert d2.shape == (B2, 1)
    assert jnp.allclose(d2, ref2, atol=1e-5, rtol=1e-5)

    print("KERNEL_OK")
</pallas_src>

<mosaic_0001>
module attributes {stable_mosaic.version = 11 : i64} {
  func.func @_disc_cond_kernel(%arg0: i32, %arg1: memref<8x32xf32, #tpu.memory_space<vmem>>, %arg2: memref<8x1xi32, #tpu.memory_space<vmem>>, %arg3: memref<32x4xf32, #tpu.memory_space<vmem>>, %arg4: memref<1x1xf32, #tpu.memory_space<smem>>, %arg5: memref<1x1x8xf32, #tpu.memory_space<vmem>>) attributes {dimension_semantics = [#tpu.dimension_semantics<parallel>], iteration_bounds = array<i64: 1>, scalar_prefetch = 0 : i64, scratch_operands = 0 : i64, tpu.core_type = #tpu.core_type<tc>, window_params = [{transform_indices = @transform_0, window_bounds = array<i64: 8, 32>}, {transform_indices = @transform_1, window_bounds = array<i64: 8, 1>}, {pipeline_mode = #tpu.pipeline_mode<synchronous>, transform_indices = @transform_2, window_bounds = array<i64: 32, 4>}, {transform_indices = @transform_3, window_bounds = array<i64: 1, 1>}, {transform_indices = @transform_4, window_bounds = array<i64: 1, 1, 8>}]} {
    %c0 = arith.constant 0 : index
    %c0_0 = arith.constant 0 : index
    %0 = vector.load %arg1[%c0, %c0_0] : memref<8x32xf32, #tpu.memory_space<vmem>>, vector<8x32xf32>
    %c0_1 = arith.constant 0 : index
    %c0_2 = arith.constant 0 : index
    %1 = vector.load %arg3[%c0_1, %c0_2] : memref<32x4xf32, #tpu.memory_space<vmem>>, vector<32x4xf32>
    %cst = arith.constant dense<0.000000e+00> : vector<8x4xf32>
    %2 = tpu.matmul %0, %1, %cst {dimension_numbers = #tpu.dot_dimension_numbers<[1], [0], [0], [1], [0, 0, 1, 1], [], []>} : vector<8x32xf32>, vector<32x4xf32>, vector<8x4xf32> -> vector<8x4xf32>
    %3 = tpu.iota {dimensions = array<i32: 1>} : vector<8x4xi32>
    %c0_3 = arith.constant 0 : index
    %c0_4 = arith.constant 0 : index
    %4 = vector.load %arg2[%c0_3, %c0_4] : memref<8x1xi32, #tpu.memory_space<vmem>>, vector<8x1xi32>
    %5 = vector.broadcast %4 : vector<8x1xi32> to vector<8x4xi32>
    %6 = arith.cmpi eq, %3, %5 : vector<8x4xi32>
    %cst_5 = arith.constant 0.000000e+00 : f32
    %7 = vector.broadcast %cst_5 : f32 to vector<8x4xf32>
    %8 = arith.select %6, %2, %7 : vector<8x4xi1>, vector<8x4xf32>
    %cst_6 = arith.constant dense<0.000000e+00> : vector<8xf32>
    %9 = vector.multi_reduction <add>, %8, %cst_6 [1] : vector<8x4xf32> to vector<8xf32>
    %c0_7 = arith.constant 0 : index
    %c0_8 = arith.constant 0 : index
    %10 = memref.load %arg4[%c0_7, %c0_8] : memref<1x1xf32, #tpu.memory_space<smem>>
    %11 = vector.broadcast %10 : f32 to vector<8xf32>
    %12 = arith.addf %9, %11 : vector<8xf32>
    %13 = vector.shape_cast %12 : vector<8xf32> to vector<1x1x8xf32>
    %c0_9 = arith.constant 0 : index
    %c0_10 = arith.constant 0 : index
    %c0_11 = arith.constant 0 : index
    %14 = vector.load %arg5[%c0_9, %c0_10, %c0_11] : memref<1x1x8xf32, #tpu.memory_space<vmem>>, vector<1x1x8xf32>
    tpu.vector_store %arg5[%c0_9, %c0_10, %c0_11], %13 {strides = array<i32>} : memref<1x1x8xf32, #tpu.memory_space<vmem>>, vector<1x1x8xf32>,
    return
  }
  func.func @transform_0(%arg0: i32) -> (i32, i32) {
    %c0_i32 = arith.constant 0 : i32
    %c0_i32_0 = arith.constant 0 : i32
    return %arg0, %c0_i32 : i32, i32
  }
  func.func @transform_1(%arg0: i32) -> (i32, i32) {
    %c0_i32 = arith.constant 0 : i32
    %c0_i32_0 = arith.constant 0 : i32
    return %arg0, %c0_i32 : i32, i32
  }
  func.func @transform_2(%arg0: i32) -> (i32, i32) {
    %c0_i32 = arith.constant 0 : i32
    %c0_i32_0 = arith.constant 0 : i32
    %c0_i32_1 = arith.constant 0 : i32
    return %c0_i32, %c0_i32_0 : i32, i32
  }
  func.func @transform_3(%arg0: i32) -> (i32, i32) {
    %c0_i32 = arith.constant 0 : i32
    %c0_i32_0 = arith.constant 0 : i32
    %c0_i32_1 = arith.constant 0 : i32
    return %c0_i32, %c0_i32_0 : i32, i32
  }
  func.func @transform_4(%arg0: i32) -> (i32, i32, i32) {
    %c0_i32 = arith.constant 0 : i32
    %c0_i32_0 = arith.constant 0 : i32
    %c0_i32_1 = arith.constant 0 : i32
    return %arg0, %c0_i32, %c0_i32_0 : i32, i32, i32
  }
}

</mosaic_0001>

<llo_original>
// kernel: tpu_custom_call.1
$region0: #{tpu_custom_call.1}
  #allocation0 [shape = 'u32[]', space=smem, size = 0x4, offset = 0x4, fixed_abs, tag = 'smem constant byte address 0x4 - core index']
  #allocation1 [shape = 'u32[144,128]{1,0:T(1,128)}', space=vmem, size = 0x12000, scoped, tag = 'internal scratch']
  #allocation2 [shape = 'f32[1,1]{1,0:T(1,128)S(6)}', space=smem, size = 0x200, scoped, tag = 'scoped memory for tpu_custom_call.1']
  %s0 = inlined_call_operand.vmem [shape: f32[8,32], index: 0, kind: input, shape index: {}]
  %s1 = inlined_call_operand.vmem [shape: s32[8,1], index: 1, kind: input, shape index: {}]
  %s2 = inlined_call_operand.vmem [shape: f32[32,4], index: 2, kind: input, shape index: {}]
  %s3 = inlined_call_operand.<no memory space> [shape: f32[1,1], index: 3, kind: input, shape index: {}]
  %s4 = inlined_call_operand.hbm [shape: f32[1,1,8], index: 4, kind: output, shape index: {}]
  %s5 = sld [smem:[#allocation0]]
  $region26: #{tpu_custom_call.1} parent=0
    _
  %s7 = ssub.s32 1, %s5
  %s8 = scalar_select 0, %s7, %s5
  %9 = sst [smem:[#allocation2]] %s3
  $region1: #{tpu_custom_call.1} parent=0
    #allocation3 [shape = 'u8[512]{0}', space=vmem, size = 0x400, scoped, tag = 'output window, operand 0, single buffered']
    #allocation4 [shape = 's32[1]{0}', space=sflag, size = 0x4, scoped, tag = 'scoped memory for tpu_custom_call.1']
    %10 = vsyncpa [#allocation4], 0
    // Predicated region
    $region2: #{tpu_custom_call.1} parent=1 // pred_check
      _
    $region3: #{tpu_custom_call.1} parent=1 // pred_check_branch
      %12 = sbr.rel (0) target = $region5
    $region4: #{tpu_custom_call.1} parent=1 // pred_region
      _
    $region5: #{tpu_custom_call.1} parent=1 // pred_fallthru
      _
    // Predicated region
    $region6: #{tpu_custom_call.1} parent=1 // pred_check
      _
    $region7: #{tpu_custom_call.1} parent=1 // pred_check_branch
      %14 = sbr.rel (0) target = $region9
    $region8: #{tpu_custom_call.1} parent=1 // pred_region
      _
    $region9: #{tpu_custom_call.1} parent=1 // pred_fallthru
      _
    // Predicated region
    $region10: #{tpu_custom_call.1} parent=1 // pred_check
      _
    $region11: #{tpu_custom_call.1} parent=1 // pred_check_branch
      %16 = sbr.rel (0) target = $region13
    $region12: #{tpu_custom_call.1} parent=1 // pred_region
      _
    $region13: #{tpu_custom_call.1} parent=1 // pred_fallthru
      _
    // Predicated region
    $region14: #{tpu_custom_call.1} parent=1 // pred_check
      _
    $region15: #{tpu_custom_call.1} parent=1 // pred_check_branch
      %18 = sbr.rel (0) target = $region17
    $region16: #{tpu_custom_call.1} parent=1 // pred_region
      _
    $region17: #{tpu_custom_call.1} parent=1 // pred_fallthru
      _
    %v19 = vld [vmem:[%s0] sm:$0xff]
    %v20 = vld [vmem:[%s2] sm:$0xff]
    %v21 = vld [vmem:[%s2 + $0x8] sm:$0xff]
    %v22 = vld [vmem:[%s2 + $0x10] sm:$0xff]
    %v23 = vld [vmem:[%s2 + $0x18] sm:$0xff]
    %vm24 = vcmask 261120
    %v26 = vsel %vm24, %v19, 0
    %28 = vmatprep.subr.mxu0 0.0
    %29 = vmatpush1.msra.mxu0 %v20
    %30 = vmatprep.subr.mxu0 0.0
    %31 = vmatpush1.msra.mxu0 %v21
    %32 = vmatprep.subr.mxu0 0.0
    %33 = vmatpush1.msra.mxu0 %v22
    %34 = vmatprep.subr.mxu0 0.0
    %35 = vmatpush1.msra.mxu0 %v23
    %36 = vmatprep.subr.mxu0 0.0
    %37 = vmatpush1.msra.mxu0 0.0
    %38 = vmatprep.subr.mxu0 0.0
    %39 = vmatpush1.msra.mxu0 0.0
    %40 = vmatprep.subr.mxu0 0.0
    %41 = vmatpush1.msra.mxu0 0.0
    %42 = vmatprep.subr.mxu0 0.0
    %43 = vmatpush1.msra.mxu0 0.0
    %44 = vmatprep.subr.mxu0 0.0
    %45 = vmatpush1.msra.mxu0 0.0
    %46 = vmatprep.subr.mxu0 0.0
    %47 = vmatpush1.msra.mxu0 0.0
    %48 = vmatprep.subr.mxu0 0.0
    %49 = vmatpush1.msra.mxu0 0.0
    %50 = vmatprep.subr.mxu0 0.0
    %51 = vmatpush1.msra.mxu0 0.0
    %52 = vmatprep.subr.mxu0 0.0
    %53 = vmatpush1.msra.mxu0 0.0
    %54 = vmatprep.subr.mxu0 0.0
    %55 = vmatpush1.msra.mxu0 0.0
    %56 = vmatprep.subr.mxu0 0.0
    %57 = vmatpush1.msra.mxu0 0.0
    %58 = vmatprep.subr.mxu0 0.0
    %59 = vmatpush1.msra.mxu0 0.0
    %60 = vmatprep.subr.mxu0 0.0
    %61 = vmatpush1.msra.mxu0 0.0
    %62 = vmatprep.subr.mxu0 0.0
    %63 = vmatpush1.msra.mxu0 0.0
    %64 = vmatprep.subr.mxu0 0.0
    %65 = vmatpush1.msra.mxu0 0.0
    %66 = vmatprep.subr.mxu0 0.0
    %67 = vmatpush1.msra.mxu0 0.0
    %68 = vmatprep.subr.mxu0 0.0
    %69 = vmatpush1.msra.mxu0 0.0
    %70 = vmatprep.subr.mxu0 0.0
    %71 = vmatpush1.msra.mxu0 0.0
    %72 = vmatprep.subr.mxu0 0.0
    %73 = vmatpush1.msra.mxu0 0.0
    %74 = vmatprep.subr.mxu0 0.0
    %75 = vmatpush1.msra.mxu0 0.0
    %76 = vmatprep.subr.mxu0 0.0
    %77 = vmatpush1.msra.mxu0 0.0
    %78 = vmatprep.subr.mxu0 0.0
    %79 = vmatpush1.msra.mxu0 0.0
    %80 = vmatprep.subr.mxu0 0.0
    %81 = vmatpush1.msra.mxu0 0.0
    %82 = vmatprep.subr.mxu0 0.0
    %83 = vmatpush1.msra.mxu0 0.0
    %84 = vmatprep.subr.mxu0 0.0
    %85 = vmatpush1.msra.mxu0 0.0
    %86 = vmatprep.subr.mxu0 0.0
    %87 = vmatpush1.msra.mxu0 0.0
    %88 = vmatprep.subr.mxu0 0.0
    %89 = vmatpush1.msra.mxu0 0.0
    %90 = vmatprep.subr.mxu0 0.0
    %91 = vmatpush1.msra.mxu0 0.0
    %92 = vmatprep.mubr.f32.mxu0 0.0
    %93 = vmatmul.mubr.f32.gmra.mrb[0].mxu0 %v26
    %v94 = vpop.f32.mrb[0].mxu0
    %v95 = vadd.f32 0.0, %v94
    %v96 = vpop.f32.mrb[0].mxu0
    %97 = vdwg.mxu0
    %v98 = vlaneseq
    %v99 = vand.u32 %v98, 127
    %v100 = vld [vmem:[%s1] sm:$0xff]
    %101 = vset.pattern.permute.xlu0 0
    %102 = vperm.xlu0 %101, %v100
    %v103 = vpop.permute.xlu0 %102
    %vm104 = vcmp.eq.s32.totalorder %v99, %v103
    %v105 = vsel %vm104, %v95, 0.0
    %vm106 = vcmask 31744
    %v107 = vsel %vm106, %v105, 0.0
    %108 = vadd.xlane.f32.xlu0 %v107
    %v109 = vpop.xlane.xlu0 %108
    %s110 = sld [smem:[#allocation2]]
    %v111 = vstv %s110
    %v112 = vadd.f32 %v109, %v111
    %v114 = vlaneseq
    %v115 = vshrl.u32 %v114, 7
    %v116 = vsub.s32 %v99, %v115
    %v117 = vrot.slane %v112, %v116
    %vm119 = vcmask 57344
    %120 = vst.msk [vmem:[#allocation3] sm:$0x1] %vm119, %v117
    // Predicated region
    $region18: #{tpu_custom_call.1} parent=1 // pred_check
      _
    $region19: #{tpu_custom_call.1} parent=1 // pred_check_branch
      %122 = sbr.rel (0) target = $region21
    $region20: #{tpu_custom_call.1} parent=1 // pred_region
      %s124 = ssub.s32 16, 16
      %125 = vsyncadd [#allocation4], %s124
      %s127 = sshll.u32 [#allocation3], 4
      %s128 = int_to_ptr.vmem [resolvable:$true] %s127
      %130 = dma.vmem_to_hbm [thread:$0]  %s128, 16, %s4, [#allocation4]
    $region21: #{tpu_custom_call.1} parent=1 // pred_fallthru
      _
    // Predicated region
    $region22: #{tpu_custom_call.1} parent=1 // pred_check
      _
    $region23: #{tpu_custom_call.1} parent=1 // pred_check_branch
      %132 = sbr.rel (0) target = $region25
    $region24: #{tpu_custom_call.1} parent=1 // pred_region
      %133 = dma.done [#allocation4], 16
    $region25: #{tpu_custom_call.1} parent=1 // pred_fallthru
      _
    %134 = vsyncpa [#allocation4], 1

</llo_original>
